<compile_context>
chip_gen: v5e
topology: v5e:2x2
jax: 0.10.0
libtpu: 0.0.40
codegen_flags: <defaults>
</compile_context>

<pallas_src>
import jax
import jax.numpy as jnp
from jax.experimental import pallas as pl
from jax.experimental.pallas import tpu as pltpu


_LANE = 128            # TPU lane width
_MAX_LANE_W = 1024     # widest lane-dense slab width we aim for
_TILE_ROWS = 1024      # 1024 x 1024 f32 tile = 4 MiB; in+out double-buffered
                       # = 4 tile buffers = 16 MiB < v7x 32 MiB scoped VMEM


def _copy_kernel(x_ref, o_ref):
    # Whole-tile load/store: the node's output materialization hot path.
    o_ref[...] = x_ref[...]


def _choose_slab_width(total):
    """Widest lane width in {128,...,1024} that minimizes padding."""
    best_w = _LANE
    best_padded = pl.cdiv(total, _LANE) * _LANE
    w = _LANE
    while w < _MAX_LANE_W:
        w *= 2
        padded = pl.cdiv(total, w) * w
        if padded <= best_padded:
            best_w, best_padded = w, padded
    return best_w, best_padded


def _pallas_copy_2d(x2d):
    rows, cols = x2d.shape
    tile_rows = min(_TILE_ROWS, rows)   # rows is a multiple of tile_rows by
    grid = (rows // tile_rows,)         # construction in pallas_identity()
    tile_bytes = tile_rows * cols * x2d.dtype.itemsize
    vmem_limit = min(32 * 1024 * 1024, max(8 * 1024 * 1024, 6 * tile_bytes))
    return pl.pallas_call(
        _copy_kernel,
        out_shape=jax.ShapeDtypeStruct((rows, cols), x2d.dtype),
        grid=grid,
        in_specs=[pl.BlockSpec((tile_rows, cols), lambda i: (i, 0))],
        out_specs=pl.BlockSpec((tile_rows, cols), lambda i: (i, 0)),
        # Identity copy: write back into the input's HBM buffer instead of
        # allocating a second full-size output buffer.
        input_output_aliases={0: 0},
        cost_estimate=pl.CostEstimate(
            flops=0,
            transcendentals=0,
            bytes_accessed=2 * rows * cols * x2d.dtype.itemsize,
        ),
        compiler_params=pltpu.CompilerParams(
            dimension_semantics=("parallel",),   # shards across v7x's 2 TCs
            vmem_limit_bytes=vmem_limit,
        ),
    )(x2d)


def pallas_identity(x):
    """Materialize `x` through a tiled, lane-dense Pallas copy kernel."""
    total = x.size
    w, padded_total = _choose_slab_width(total)
    rows = padded_total // w
    if rows > _TILE_ROWS:
        # Tiled path: pad rows to a multiple of the tile (tile is 8-aligned).
        rows = pl.cdiv(rows, _TILE_ROWS) * _TILE_ROWS
        padded_total = rows * w
    flat = x.reshape(total)
    if padded_total != total:
        flat = jnp.pad(flat, (0, padded_total - total))
    y2d = _pallas_copy_2d(flat.reshape(rows, w))
    y = y2d.reshape(padded_total)
    if padded_total != total:
        y = y[:total]
    return y.reshape(x.shape)


class Node:
    """JAX/Pallas mirror of the PyTorch `Node` base class."""

    def __init__(self):
        self.shape = None
        self.output = None

    # --- shape bookkeeping (pure Python, same as reference) -----------------
    @property
    def numeric_shape(self):
        return self.calc_numeric_shape(self.shape)

    def calc_numeric_shape(self, shape):
        return [dimention.value for dimention in shape]

    @property
    def named_shape(self):
        return self.calc_named_shape(self.shape)

    def calc_named_shape(self, shape):
        return [dimention.name for dimention in shape]

    # --- forward semantics ---------------------------------------------------
    def reset(self):
        # Reference raises NotImplementedError; concrete node clears the cache.
        self.output = None

    def node_forward(self, **inputs):
        if self.output is None:
            self.output = self._node_forward(**inputs)
        return self.output

    def _node_forward(self, **inputs):
        # TODO(synk): `_node_forward` is abstract in the reference; this
        # concrete node is an identity pass-through.  A production identity
        # node should simply `return inputs["x"]` with no kernel launch; the
        # Pallas copy below exists to demonstrate the node's tensor
        # materialization path with an optimized (tiled, lane-dense, aliased)
        # layout.
        return pallas_identity(inputs["x"])

    def forward(self, **inputs):
        self.reset()
        return self.node_forward(**inputs)

    __call__ = forward


if __name__ == "__main__":
    key = jax.random.PRNGKey(0)
    x = jax.random.normal(key, (2, 4, 16, 16), dtype=jnp.float32)  # NCHW

    node = Node()
    out = node(x=x)
    out = jax.block_until_ready(out)

    # Semantics checks: identity pass-through + memoization within a forward.
    assert out.shape == x.shape and out.dtype == x.dtype
    assert bool(jnp.allclose(out, x))
    cached = node.node_forward(x=x)          # second call returns cached output
    assert cached is node.output

    print("KERNEL_OK")
</pallas_src>

<mosaic_0001>
module attributes {stable_mosaic.version = 11 : i64} {
  func.func @_copy_kernel(%arg0: i32, %arg1: memref<2x1024xf32, #tpu.memory_space<vmem>>, %arg2: memref<2x1024xf32, #tpu.memory_space<vmem>>) attributes {dimension_semantics = [#tpu.dimension_semantics<parallel>], iteration_bounds = array<i64: 1>, scalar_prefetch = 0 : i64, scratch_operands = 0 : i64, tpu.core_type = #tpu.core_type<tc>, window_params = [{transform_indices = @transform_0, window_bounds = array<i64: 2, 1024>}, {transform_indices = @transform_1, window_bounds = array<i64: 2, 1024>}]} {
    %c0 = arith.constant 0 : index
    %c0_0 = arith.constant 0 : index
    %0 = vector.load %arg1[%c0, %c0_0] : memref<2x1024xf32, #tpu.memory_space<vmem>>, vector<2x1024xf32>
    %c0_1 = arith.constant 0 : index
    %c0_2 = arith.constant 0 : index
    %1 = vector.load %arg2[%c0_1, %c0_2] : memref<2x1024xf32, #tpu.memory_space<vmem>>, vector<2x1024xf32>
    tpu.vector_store %arg2[%c0_1, %c0_2], %0 {strides = array<i32>} : memref<2x1024xf32, #tpu.memory_space<vmem>>, vector<2x1024xf32>,
    return
  }
  func.func @transform_0(%arg0: i32) -> (i32, i32) {
    %c0_i32 = arith.constant 0 : i32
    %c0_i32_0 = arith.constant 0 : i32
    return %arg0, %c0_i32 : i32, i32
  }
  func.func @transform_1(%arg0: i32) -> (i32, i32) {
    %c0_i32 = arith.constant 0 : i32
    %c0_i32_0 = arith.constant 0 : i32
    return %arg0, %c0_i32 : i32, i32
  }
}

</mosaic_0001>

<llo_original>
// kernel: tpu_custom_call.1
$region0: #{tpu_custom_call.1}
  #allocation0 [shape = 'u32[]', space=smem, size = 0x4, offset = 0x4, fixed_abs, tag = 'smem constant byte address 0x4 - core index']
  #allocation1 [shape = 'u32[72,128]{1,0:T(1,128)}', space=vmem, size = 0x9000, scoped, tag = 'internal scratch']
  %s0 = inlined_call_operand.hbm [shape: f32[2,1024], index: 0, kind: input, shape index: {}, may-alias: {0,1}]
  %s1 = inlined_call_operand.hbm [shape: f32[2,1024], index: 1, kind: output, shape index: {}, may-alias: {0,1}]
  %s2 = sld [smem:[#allocation0]]
  $region18: #{tpu_custom_call.1} parent=0
    _
  %s4 = ssub.s32 1, %s2
  %s5 = scalar_select 0, %s4, %s2
  $region1: #{tpu_custom_call.1} parent=0
    #allocation2 [shape = 'u8[8192]{0}', space=vmem, size = 0x2000, scoped, tag = 'input window, operand 0, single buffered']
    #allocation3 [shape = 's32[1]{0}', space=sflag, size = 0x4, scoped, tag = 'scoped memory for tpu_custom_call.1']
    #allocation4 [shape = 's32[1]{0}', space=sflag, size = 0x4, scoped, tag = 'scoped memory for tpu_custom_call.1']
    #allocation5 [shape = 'u8[8192]{0}', space=vmem, size = 0x2000, scoped, tag = 'output window, operand 0, single buffered']
    %6 = vsyncpa [#allocation3], 0
    %7 = vsyncpa [#allocation4], 0
    // Predicated region
    $region2: #{tpu_custom_call.1} parent=1 // pred_check
      _
    $region3: #{tpu_custom_call.1} parent=1 // pred_check_branch
      %9 = sbr.rel (0) target = $region5
    $region4: #{tpu_custom_call.1} parent=1 // pred_region
      %11 = vsyncadd [#allocation3], 0
      %s13 = sshll.u32 %s0, 4
      %s14 = int_to_ptr.hbm [resolvable:$true] %s13
      %s15 = sshll.u32 [#allocation2], 4
      %s16 = int_to_ptr.vmem [resolvable:$true] %s15
      %18 = dma.hbm_to_vmem [thread:$0]  %s14, 256, %s16, [#allocation3]
    $region5: #{tpu_custom_call.1} parent=1 // pred_fallthru
      _
    // Predicated region
    $region6: #{tpu_custom_call.1} parent=1 // pred_check
      _
    $region7: #{tpu_custom_call.1} parent=1 // pred_check_branch
      %20 = sbr.rel (0) target = $region9
    $region8: #{tpu_custom_call.1} parent=1 // pred_region
      %22 = dma.done [#allocation3], 256
    $region9: #{tpu_custom_call.1} parent=1 // pred_fallthru
      _
    %v23 = vld [vmem:[#allocation2] sm:$0xff]
    %v24 = vld [vmem:[#allocation2 + $0x8] sm:$0xff]
    %25 = vst [vmem:[#allocation5] sm:$0xff] %v23
    %26 = vst [vmem:[#allocation5 + $0x8] sm:$0xff] %v24
    // Predicated region
    $region10: #{tpu_custom_call.1} parent=1 // pred_check
      _
    $region11: #{tpu_custom_call.1} parent=1 // pred_check_branch
      %28 = sbr.rel (0) target = $region13
    $region12: #{tpu_custom_call.1} parent=1 // pred_region
      %30 = vsyncadd [#allocation4], 0
      %s32 = sshll.u32 [#allocation5], 4
      %s33 = int_to_ptr.vmem [resolvable:$true] %s32
      %s34 = sshll.u32 %s1, 4
      %s35 = int_to_ptr.hbm [resolvable:$true] %s34
      %37 = dma.vmem_to_hbm [thread:$0]  %s33, 256, %s35, [#allocation4]
    $region13: #{tpu_custom_call.1} parent=1 // pred_fallthru
      _
    // Predicated region
    $region14: #{tpu_custom_call.1} parent=1 // pred_check
      _
    $region15: #{tpu_custom_call.1} parent=1 // pred_check_branch
      %39 = sbr.rel (0) target = $region17
    $region16: #{tpu_custom_call.1} parent=1 // pred_region
      %41 = dma.done [#allocation4], 256
    $region17: #{tpu_custom_call.1} parent=1 // pred_fallthru
      _
    %42 = vsyncpa [#allocation3], 1
    %43 = vsyncpa [#allocation4], 1

</llo_original>
